<compile_context>
chip_gen: v6e
topology: v6e:2x2x1
jax: 0.10.0
libtpu: 0.0.40
codegen_flags: <defaults>
</compile_context>

<pallas_src>
import functools

import jax
import jax.numpy as jnp
from jax.experimental import pallas as pl
from jax.experimental.pallas import tpu as pltpu


def _attention_kernel(x_ref, wqkv_ref, wp_ref, b_ref, o_ref, acc_ref,
                      *, scale: float, head_dim: int):
    """One grid step = one (batch element, head).

    x_ref    : (1, N, C)   bf16  (resident across the head axis)
    wqkv_ref : (1, C, 3D)  bf16  fused per-head Q|K|V projection (pre-transposed)
    wp_ref   : (1, D, C)   bf16  per-head slice of the output projection
    b_ref    : (1, C)      f32   output-projection bias
    o_ref    : (1, N, C)   out dtype (resident across the head axis)
    acc_ref  : (N, C)      f32   scratch accumulator over heads
    """
    h = pl.program_id(1)
    last_h = pl.num_programs(1) - 1
    D = head_dim

    @pl.when(h == 0)
    def _():
        acc_ref[...] = jnp.zeros_like(acc_ref)

    x = x_ref[0]                       # (N, C)  bf16
    wqkv = wqkv_ref[0]                 # (C, 3D) bf16
    wp = wp_ref[0]                     # (D, C)  bf16

    # --- fused per-head Q/K/V projection (one MXU matmul, f32 accumulation) --
    qkv = jnp.dot(x, wqkv, preferred_element_type=jnp.float32)       # (N, 3D) f32
    q = qkv[:, 0 * D:1 * D] * scale                                  # (N, D)  f32
    k = qkv[:, 1 * D:2 * D]                                          # (N, D)  f32
    v = qkv[:, 2 * D:3 * D]                                          # (N, D)  f32

    # --- scaled dot-product attention ---------------------------------------
    # QK^T: contract D on both operands (no explicit activation transpose).
    logits = jnp.einsum('nd,md->nm',
                        q.astype(jnp.bfloat16), k.astype(jnp.bfloat16),
                        preferred_element_type=jnp.float32)          # (N, N) f32

    m = jnp.max(logits, axis=-1, keepdims=True)                      # (N, 1)
    p = jnp.exp(logits - m)                                          # (N, N) f32
    denom = jnp.sum(p, axis=-1, keepdims=True)                       # (N, 1)

    o = jnp.dot(p.astype(jnp.bfloat16), v.astype(jnp.bfloat16),
                preferred_element_type=jnp.float32)                  # (N, D) f32
    # Fold the softmax normalization into the small (N, D) result instead of
    # dividing the (N, N) attention matrix; approx reciprocal runs on the EUP.
    o = o * pl.reciprocal(denom, approx=True)

    # --- merge-heads folded into the output projection ----------------------
    acc_ref[...] += jnp.dot(o.astype(jnp.bfloat16), wp,
                            preferred_element_type=jnp.float32)      # (N, C)

    @pl.when(h == last_h)
    def _():
        o_ref[0] = (acc_ref[...] + b_ref[...]).astype(o_ref.dtype)


def attention_forward(x, w_qkv, w_proj, b_proj, *, num_heads: int):
    """x: (B, N, C). w_qkv: (3C, C), w_proj: (C, C), b_proj: (C,) in PyTorch
    nn.Linear layout (out, in). Returns (B, N, C) in x.dtype."""
    B, N, C = x.shape
    H = num_heads
    D = C // H
    scale = D ** (-0.5)
    out_dtype = x.dtype

    # ---- one-time weight re-layout in the wrapper (no in-kernel transposes) ----
    # PyTorch Linear: y = x @ W.T, W is (out, in).  W.T is (C_in, C_out).
    wq, wk, wv = w_qkv[0:C], w_qkv[C:2 * C], w_qkv[2 * C:3 * C]      # each (C, C)
    wq_h = wq.T.reshape(C, H, D).transpose(1, 0, 2)                  # (H, C, D)
    wk_h = wk.T.reshape(C, H, D).transpose(1, 0, 2)
    wv_h = wv.T.reshape(C, H, D).transpose(1, 0, 2)
    # Fused per-head projection weight: columns are [q_h | k_h | v_h].
    wqkv_h = jnp.concatenate([wq_h, wk_h, wv_h], axis=-1).astype(jnp.bfloat16)  # (H, C, 3D)
    # Output projection: per-head slices of W_proj.T -> (H, D, C).
    wp_h = w_proj.T.reshape(H, D, C).astype(jnp.bfloat16)
    b2 = b_proj.reshape(1, C).astype(jnp.float32)

    x_bf = x.astype(jnp.bfloat16)

    # Advisory cost estimate for the XLA scheduler.
    flops = 2 * B * (N * C * 3 * C + 2 * H * N * N * D + N * C * C)
    bytes_accessed = (B * N * C * 2              # x (bf16)
                      + 4 * C * C * 2            # qkv + proj weights (bf16)
                      + C * 4                    # bias
                      + B * N * C * 4)           # output
    cost = pl.CostEstimate(flops=flops,
                           transcendentals=B * H * N * N,
                           bytes_accessed=bytes_accessed)

    kernel = functools.partial(_attention_kernel, scale=scale, head_dim=D)

    return pl.pallas_call(
        kernel,
        out_shape=jax.ShapeDtypeStruct((B, N, C), out_dtype),
        grid_spec=pltpu.PrefetchScalarGridSpec(
            num_scalar_prefetch=0,
            grid=(B, H),                                             # head axis innermost
            in_specs=[
                pl.BlockSpec((1, N, C), lambda b, h: (b, 0, 0)),     # x (reused across h)
                pl.BlockSpec((1, C, 3 * D), lambda b, h: (h, 0, 0)),  # fused Wqkv head slice
                pl.BlockSpec((1, D, C), lambda b, h: (h, 0, 0)),     # Wproj head slice
                pl.BlockSpec((1, C), lambda b, h: (0, 0)),           # proj bias
            ],
            out_specs=pl.BlockSpec((1, N, C), lambda b, h: (b, 0, 0)),
            scratch_shapes=[pltpu.VMEM((N, C), jnp.float32)],        # head accumulator
        ),
        compiler_params=pltpu.CompilerParams(
            dimension_semantics=("parallel", "arbitrary"),
            vmem_limit_bytes=32 * 1024 * 1024),
        cost_estimate=cost,
    )(x_bf, wqkv_h, wp_h, b2)


def attention_reference(x, w_qkv, w_proj, b_proj, *, num_heads: int):
    """Pure-JAX f32 reference mirroring the PyTorch forward."""
    B, N, C = x.shape
    D = C // num_heads
    scale = D ** (-0.5)
    qkv = jnp.einsum('bnc,oc->bno', x, w_qkv)                 # (B, N, 3C)
    qkv = qkv.reshape(B, N, 3, num_heads, D).transpose(2, 0, 3, 1, 4)
    q, k, v = qkv[0], qkv[1], qkv[2]                          # (B, H, N, D)
    attn = jnp.einsum('bhnd,bhmd->bhnm', q, k) * scale
    attn = jax.nn.softmax(attn, axis=-1)
    out = jnp.einsum('bhnm,bhmd->bhnd', attn, v)
    out = out.transpose(0, 2, 1, 3).reshape(B, N, C)
    return jnp.einsum('bnc,oc->bno', out, w_proj) + b_proj


if __name__ == "__main__":
    # Small shapes consistent with the module: B=2, seq N=8, embed C=32,
    # num_heads=8 -> head_dim=4. qkv_bias=False (module default).
    B, N, C, H = 2, 8, 32, 8

    key = jax.random.PRNGKey(0)
    kx, kqkv, kproj, kb = jax.random.split(key, 4)
    x = jax.random.normal(kx, (B, N, C), dtype=jnp.float32)
    w_qkv = 0.1 * jax.random.normal(kqkv, (3 * C, C), dtype=jnp.float32)   # Linear(C, 3C).weight
    w_proj = 0.1 * jax.random.normal(kproj, (C, C), dtype=jnp.float32)     # Linear(C, C).weight
    b_proj = 0.1 * jax.random.normal(kb, (C,), dtype=jnp.float32)          # Linear(C, C).bias

    out = attention_forward(x, w_qkv, w_proj, b_proj, num_heads=H)
    out = jax.block_until_ready(out)

    ref = attention_reference(x, w_qkv, w_proj, b_proj, num_heads=H)
    assert out.shape == (B, N, C)
    # bf16 MXU operands + approx reciprocal -> relaxed tolerance vs f32 reference.
    assert jnp.allclose(out, ref, atol=2e-2, rtol=2e-2), "mismatch vs reference"

    print("KERNEL_OK")
</pallas_src>

<mosaic_0001>
module attributes {stable_mosaic.version = 11 : i64} {
  func.func @_attention_kernel(%arg0: i32, %arg1: i32, %arg2: memref<1x8x32xbf16, #tpu.memory_space<vmem>>, %arg3: memref<1x32x12xbf16, #tpu.memory_space<vmem>>, %arg4: memref<1x4x32xbf16, #tpu.memory_space<vmem>>, %arg5: memref<1x32xf32, #tpu.memory_space<vmem>>, %arg6: memref<1x8x32xf32, #tpu.memory_space<vmem>>, %arg7: memref<8x32xf32, #tpu.memory_space<vmem>>) attributes {dimension_semantics = [#tpu.dimension_semantics<parallel>, #tpu.dimension_semantics<arbitrary>], iteration_bounds = array<i64: 2, 8>, scalar_prefetch = 0 : i64, scratch_operands = 1 : i64, tpu.core_type = #tpu.core_type<tc>, window_params = [{transform_indices = @transform_0, window_bounds = array<i64: 1, 8, 32>}, {transform_indices = @transform_1, window_bounds = array<i64: 1, 32, 12>}, {transform_indices = @transform_2, window_bounds = array<i64: 1, 4, 32>}, {pipeline_mode = #tpu.pipeline_mode<synchronous>, transform_indices = @transform_3, window_bounds = array<i64: 1, 32>}, {transform_indices = @transform_4, window_bounds = array<i64: 1, 8, 32>}]} {
    %c0_i32 = arith.constant 0 : i32
    %0 = arith.cmpi eq, %arg1, %c0_i32 : i32
    %1 = arith.extui %0 : i1 to i32
    %c0_i32_0 = arith.constant 0 : i32
    %2 = arith.cmpi ne, %1, %c0_i32_0 : i32
    scf.if %2 {
      %cst_20 = arith.constant 0.000000e+00 : f32
      %39 = vector.broadcast %cst_20 : f32 to vector<8x32xf32>
      %c0_21 = arith.constant 0 : index
      %c0_22 = arith.constant 0 : index
      %40 = vector.load %arg7[%c0_21, %c0_22] : memref<8x32xf32, #tpu.memory_space<vmem>>, vector<8x32xf32>
      tpu.vector_store %arg7[%c0_21, %c0_22], %39 {strides = array<i32>} : memref<8x32xf32, #tpu.memory_space<vmem>>, vector<8x32xf32>,
    } else {
    }
    %c0 = arith.constant 0 : index
    %c0_1 = arith.constant 0 : index
    %c0_2 = arith.constant 0 : index
    %3 = vector.load %arg2[%c0, %c0_1, %c0_2] : memref<1x8x32xbf16, #tpu.memory_space<vmem>>, vector<1x8x32xbf16>
    %4 = vector.shape_cast %3 : vector<1x8x32xbf16> to vector<8x32xbf16>
    %c0_3 = arith.constant 0 : index
    %c0_4 = arith.constant 0 : index
    %c0_5 = arith.constant 0 : index
    %5 = vector.load %arg3[%c0_3, %c0_4, %c0_5] : memref<1x32x12xbf16, #tpu.memory_space<vmem>>, vector<1x32x12xbf16>
    %6 = vector.shape_cast %5 : vector<1x32x12xbf16> to vector<32x12xbf16>
    %c0_6 = arith.constant 0 : index
    %c0_7 = arith.constant 0 : index
    %c0_8 = arith.constant 0 : index
    %7 = vector.load %arg4[%c0_6, %c0_7, %c0_8] : memref<1x4x32xbf16, #tpu.memory_space<vmem>>, vector<1x4x32xbf16>
    %8 = vector.shape_cast %7 : vector<1x4x32xbf16> to vector<4x32xbf16>
    %cst = arith.constant dense<0.000000e+00> : vector<8x12xf32>
    %9 = tpu.matmul %4, %6, %cst {dimension_numbers = #tpu.dot_dimension_numbers<[1], [0], [0], [1], [0, 0, 1, 1], [], []>} : vector<8x32xbf16>, vector<32x12xbf16>, vector<8x12xf32> -> vector<8x12xf32>
    %10 = vector.extract_strided_slice %9 {offsets = [0, 0], sizes = [8, 4], strides = [1, 1]} : vector<8x12xf32> to vector<8x4xf32>
    %cst_9 = arith.constant 5.000000e-01 : f32
    %11 = vector.broadcast %cst_9 : f32 to vector<8x4xf32>
    %12 = arith.mulf %10, %11 : vector<8x4xf32>
    %13 = vector.extract_strided_slice %9 {offsets = [0, 4], sizes = [8, 4], strides = [1, 1]} : vector<8x12xf32> to vector<8x4xf32>
    %14 = vector.extract_strided_slice %9 {offsets = [0, 8], sizes = [8, 4], strides = [1, 1]} : vector<8x12xf32> to vector<8x4xf32>
    %15 = arith.truncf %12 : vector<8x4xf32> to vector<8x4xbf16>
    %16 = arith.truncf %13 : vector<8x4xf32> to vector<8x4xbf16>
    "tpu.trace_start"() <{level = 10 : i32, message = "nd,md->nm"}> : () -> ()
    %cst_10 = arith.constant dense<0.000000e+00> : vector<8x8xf32>
    %17 = tpu.matmul %15, %16, %cst_10 {dimension_numbers = #tpu.dot_dimension_numbers<[1], [1], [0], [0], [0, 0, 1, 0], [], []>} : vector<8x4xbf16>, vector<8x4xbf16>, vector<8x8xf32> -> vector<8x8xf32>
    "tpu.trace_stop"() : () -> ()
    %cst_11 = arith.constant dense<0xFF800000> : vector<8xf32>
    %18 = vector.multi_reduction <maximumf>, %17, %cst_11 [1] : vector<8x8xf32> to vector<8xf32>
    %19 = vector.shape_cast %18 : vector<8xf32> to vector<8x1xf32>
    %20 = vector.broadcast %19 : vector<8x1xf32> to vector<8x8xf32>
    %21 = arith.subf %17, %20 : vector<8x8xf32>
    %22 = math.exp %21 : vector<8x8xf32>
    %cst_12 = arith.constant dense<0.000000e+00> : vector<8xf32>
    %23 = vector.multi_reduction <add>, %22, %cst_12 [1] : vector<8x8xf32> to vector<8xf32>
    %24 = vector.shape_cast %23 : vector<8xf32> to vector<8x1xf32>
    %25 = arith.truncf %22 : vector<8x8xf32> to vector<8x8xbf16>
    %26 = arith.truncf %14 : vector<8x4xf32> to vector<8x4xbf16>
    %cst_13 = arith.constant dense<0.000000e+00> : vector<8x4xf32>
    %27 = tpu.matmul %25, %26, %cst_13 {dimension_numbers = #tpu.dot_dimension_numbers<[1], [0], [0], [1], [0, 0, 1, 1], [], []>} : vector<8x8xbf16>, vector<8x4xbf16>, vector<8x4xf32> -> vector<8x4xf32>
    %28 = tpu.reciprocal %24 {approx = true} : vector<8x1xf32> -> vector<8x1xf32>
    %29 = vector.broadcast %28 : vector<8x1xf32> to vector<8x4xf32>
    %30 = arith.mulf %27, %29 : vector<8x4xf32>
    %c0_14 = arith.constant 0 : index
    %c0_15 = arith.constant 0 : index
    %31 = vector.load %arg7[%c0_14, %c0_15] : memref<8x32xf32, #tpu.memory_space<vmem>>, vector<8x32xf32>
    %32 = arith.truncf %30 : vector<8x4xf32> to vector<8x4xbf16>
    %cst_16 = arith.constant dense<0.000000e+00> : vector<8x32xf32>
    %33 = tpu.matmul %32, %8, %cst_16 {dimension_numbers = #tpu.dot_dimension_numbers<[1], [0], [0], [1], [0, 0, 1, 1], [], []>} : vector<8x4xbf16>, vector<4x32xbf16>, vector<8x32xf32> -> vector<8x32xf32>
    %34 = arith.addf %31, %33 : vector<8x32xf32>
    %c0_17 = arith.constant 0 : index
    %c0_18 = arith.constant 0 : index
    %35 = vector.load %arg7[%c0_17, %c0_18] : memref<8x32xf32, #tpu.memory_space<vmem>>, vector<8x32xf32>
    tpu.vector_store %arg7[%c0_17, %c0_18], %34 {strides = array<i32>} : memref<8x32xf32, #tpu.memory_space<vmem>>, vector<8x32xf32>,
    %c7_i32 = arith.constant 7 : i32
    %36 = arith.cmpi eq, %arg1, %c7_i32 : i32
    %37 = arith.extui %36 : i1 to i32
    %c0_i32_19 = arith.constant 0 : i32
    %38 = arith.cmpi ne, %37, %c0_i32_19 : i32
    scf.if %38 {
      %c0_20 = arith.constant 0 : index
      %c0_21 = arith.constant 0 : index
      %39 = vector.load %arg7[%c0_20, %c0_21] : memref<8x32xf32, #tpu.memory_space<vmem>>, vector<8x32xf32>
      %c0_22 = arith.constant 0 : index
      %c0_23 = arith.constant 0 : index
      %40 = vector.load %arg5[%c0_22, %c0_23] : memref<1x32xf32, #tpu.memory_space<vmem>>, vector<1x32xf32>
      %41 = vector.broadcast %40 : vector<1x32xf32> to vector<8x32xf32>
      %42 = arith.addf %39, %41 : vector<8x32xf32>
      %c0_24 = arith.constant 0 : index
      %c0_25 = arith.constant 0 : index
      %c0_26 = arith.constant 0 : index
      %43 = vector.load %arg6[%c0_24, %c0_25, %c0_26] : memref<1x8x32xf32, #tpu.memory_space<vmem>>, vector<1x8x32xf32>
      %44 = vector.shape_cast %43 : vector<1x8x32xf32> to vector<8x32xf32>
      %45 = vector.shape_cast %42 : vector<8x32xf32> to vector<1x8x32xf32>
      tpu.vector_store %arg6[%c0_24, %c0_25, %c0_26], %45 {strides = array<i32>} : memref<1x8x32xf32, #tpu.memory_space<vmem>>, vector<1x8x32xf32>,
    } else {
    }
    return
  }
  func.func @transform_0(%arg0: i32, %arg1: i32) -> (i32, i32, i32) {
    %c0_i32 = arith.constant 0 : i32
    %c0_i32_0 = arith.constant 0 : i32
    %c0_i32_1 = arith.constant 0 : i32
    return %arg0, %c0_i32, %c0_i32_0 : i32, i32, i32
  }
  func.func @transform_1(%arg0: i32, %arg1: i32) -> (i32, i32, i32) {
    %c0_i32 = arith.constant 0 : i32
    %c0_i32_0 = arith.constant 0 : i32
    %c0_i32_1 = arith.constant 0 : i32
    return %arg1, %c0_i32, %c0_i32_0 : i32, i32, i32
  }
  func.func @transform_2(%arg0: i32, %arg1: i32) -> (i32, i32, i32) {
    %c0_i32 = arith.constant 0 : i32
    %c0_i32_0 = arith.constant 0 : i32
    %c0_i32_1 = arith.constant 0 : i32
    return %arg1, %c0_i32, %c0_i32_0 : i32, i32, i32
  }
  func.func @transform_3(%arg0: i32, %arg1: i32) -> (i32, i32) {
    %c0_i32 = arith.constant 0 : i32
    %c0_i32_0 = arith.constant 0 : i32
    %c0_i32_1 = arith.constant 0 : i32
    return %c0_i32, %c0_i32_0 : i32, i32
  }
  func.func @transform_4(%arg0: i32, %arg1: i32) -> (i32, i32, i32) {
    %c0_i32 = arith.constant 0 : i32
    %c0_i32_0 = arith.constant 0 : i32
    %c0_i32_1 = arith.constant 0 : i32
    return %arg0, %c0_i32, %c0_i32_0 : i32, i32, i32
  }
}

</mosaic_0001>

<llo_original>
// kernel: tpu_custom_call.1
$region0: #{tpu_custom_call.1}
  #allocation0 [shape = 'u32[]', space=smem, size = 0x4, offset = 0x4, fixed_abs, tag = 'smem constant byte address 0x4 - core index']
  #allocation1 [shape = 'u32[144,128]{1,0:T(1,128)}', space=vmem, size = 0x12000, scoped, tag = 'internal scratch']
  #allocation2 [shape = 'f32[8,32]{1,0:T(8,128)}', space=vmem, size = 0x1000, scoped, tag = 'scratch operand']
  %s0 = inlined_call_operand.vmem [shape: bf16[2,8,32], index: 0, kind: input, shape index: {}]
  %s1 = inlined_call_operand.vmem [shape: bf16[8,32,12], index: 1, kind: input, shape index: {}]
  %s2 = inlined_call_operand.vmem [shape: bf16[8,4,32], index: 2, kind: input, shape index: {}]
  %s3 = inlined_call_operand.vmem [shape: f32[1,32], index: 3, kind: input, shape index: {}]
  %s4 = inlined_call_operand.hbm [shape: f32[2,8,32], index: 4, kind: output, shape index: {}]
  %s5 = sld [smem:[#allocation0]]
  $region57: #{tpu_custom_call.1} parent=0
    _
  %s7 = ssub.s32 1, %s5
  %s8 = scalar_select 0, %s7, %s5
  $region1: #{tpu_custom_call.1} parent=0
    #allocation3 [shape = 'u8[8192]{0}', space=vmem, size = 0x2000, scoped, tag = 'output window, operand 0']
    #allocation4 [shape = 's32[2]{0}', space=sflag, size = 0x8, scoped, tag = 'scoped memory for tpu_custom_call.1']
    %9 = vsyncpa [#allocation4], 0
    %s10 = scalar_lea.sflag [#allocation4], 1
    %11 = vsyncpa %s10, 0
    loop: start=0, step=1, limit=18
    $region2: #{tpu_custom_call.1} parent=1 // loop_pre_header
      _
    $region3: #{tpu_custom_call.1} parent=1 // loop_header
      %s13 = sphi 0, %s17
      %p14 = scmp.ge.s32.totalorder %s13, 18
      %s20 = sphi 0, %s32
      %s21 = sphi 0, %s28
      %s22 = sphi 0, %s20
      %s23 = sphi 0, %s21
      %s24 = sphi 0, %s22
      %s25 = sphi 0, %s23
      %s35 = sphi 0, %s37
      %s38 = sphi 0, %s35
      %s39 = sphi 0, %s38
      %s55 = sphi 0, %s39
      %s61 = sphi 0, %s63
      %s64 = sphi 0, %s61
      %s65 = sphi 0, %s64
      %s81 = sphi 0, %s65
      %s87 = sphi 0, %s89
      %s90 = sphi 0, %s87
      %s91 = sphi 0, %s90
      %s107 = sphi 0, %s91
      %s111 = sphi 0, %s111
      %s113 = sphi 0, %s111
      %s114 = sphi 0, %s113
      %s128 = sphi 0, %s114
      %s134 = sphi 0, %s136
      %s137 = sphi 0, %s134
      %s138 = sphi 0, %s137
      %s154 = sphi 0, %s138
    $region4: #{tpu_custom_call.1} parent=1 // loop_header_branch
      %16 = sbr.rel (%p14) target = $region8
    $region5: #{tpu_custom_call.1} parent=1 // loop_body
      %s18 = ssub.s32 %s13, 1
      %s19 = ssub.s32 %s13, 2
      %s26 = sadd.s32 1, %s21
      %p27 = scmp.ge.s32.totalorder %s26, 8
      %s28 = scalar_select %p27, 0, %s26
      %s29 = sadd.s32 1, %s20
      %s30 = scalar_select %p27, %s29, %s20
      %p31 = scmp.ge.s32.totalorder %s30, 2
      %s32 = scalar_select %p31, 0, %s30
      %s33 = ssub.s32 %s20, %s32
      %p34 = scmp.eq.s32.totalorder %s33, 0
      %s36 = sadd.s32 %s35, 1
      %s37 = scalar_select %p34, %s35, %s36
      %p40 = pneg %p34
      %p41 = scmp.eq.s32.totalorder %s13, 15
      %p42 = por %p40, %p41
      %p43 = scmp.ne.s32.totalorder %s35, %s38
      %p44 = scmp.eq.s32.totalorder %s13, 0
      %p45 = por %p43, %p44
      %p46 = scmp.ne.s32.totalorder %s35, %s38
      %p47 = scmp.eq.s32.totalorder %s18, 15
      %p48 = por %p46, %p47
      %p49 = scmp.ne.s32.totalorder %s38, %s39
      %p50 = scmp.eq.s32.totalorder %s18, 0
      %p51 = por %p49, %p50
      %p52 = scmp.ne.s32.totalorder %s38, %s39
      %p53 = scmp.eq.s32.totalorder %s19, 15
      %p54 = por %p52, %p53
      %p56 = scmp.ne.s32.totalorder %s39, %s55
      %p57 = scmp.eq.s32.totalorder %s19, 0
      %p58 = por %p56, %p57
      %s59 = ssub.s32 %s21, %s28
      %p60 = scmp.eq.s32.totalorder %s59, 0
      %s62 = sadd.s32 %s61, 1
      %s63 = scalar_select %p60, %s61, %s62
      %p66 = pneg %p60
      %p67 = scmp.eq.s32.totalorder %s13, 15
      %p68 = por %p66, %p67
      %p69 = scmp.ne.s32.totalorder %s61, %s64
      %p70 = scmp.eq.s32.totalorder %s13, 0
      %p71 = por %p69, %p70
      %p72 = scmp.ne.s32.totalorder %s61, %s64
      %p73 = scmp.eq.s32.totalorder %s18, 15
      %p74 = por %p72, %p73
      %p75 = scmp.ne.s32.totalorder %s64, %s65
      %p76 = scmp.eq.s32.totalorder %s18, 0
      %p77 = por %p75, %p76
      %p78 = scmp.ne.s32.totalorder %s64, %s65
      %p79 = scmp.eq.s32.totalorder %s19, 15
      %p80 = por %p78, %p79
      %p82 = scmp.ne.s32.totalorder %s65, %s81
      %p83 = scmp.eq.s32.totalorder %s19, 0
      %p84 = por %p82, %p83
      %s85 = ssub.s32 %s21, %s28
      %p86 = scmp.eq.s32.totalorder %s85, 0
      %s88 = sadd.s32 %s87, 1
      %s89 = scalar_select %p86, %s87, %s88
      %p92 = pneg %p86
      %p93 = scmp.eq.s32.totalorder %s13, 15
      %p94 = por %p92, %p93
      %p95 = scmp.ne.s32.totalorder %s87, %s90
      %p96 = scmp.eq.s32.totalorder %s13, 0
      %p97 = por %p95, %p96
      %p98 = scmp.ne.s32.totalorder %s87, %s90
      %p99 = scmp.eq.s32.totalorder %s18, 15
      %p100 = por %p98, %p99
      %p101 = scmp.ne.s32.totalorder %s90, %s91
      %p102 = scmp.eq.s32.totalorder %s18, 0
      %p103 = por %p101, %p102
      %p104 = scmp.ne.s32.totalorder %s90, %s91
      %p105 = scmp.eq.s32.totalorder %s19, 15
      %p106 = por %p104, %p105
      %p108 = scmp.ne.s32.totalorder %s91, %s107
      %p109 = scmp.eq.s32.totalorder %s19, 0
      %p110 = por %p108, %p109
      %s112 = sadd.s32 %s111, 1
      %p115 = scmp.eq.s32.totalorder %s13, 15
      %p116 = scmp.ne.s32.totalorder %s111, %s113
      %p117 = scmp.eq.s32.totalorder %s13, 0
      %p118 = por %p116, %p117
      %p119 = scmp.ne.s32.totalorder %s111, %s113
      %p120 = scmp.eq.s32.totalorder %s18, 15
      %p121 = por %p119, %p120
      %p122 = scmp.ne.s32.totalorder %s113, %s114
      %p123 = scmp.eq.s32.totalorder %s18, 0
      %p124 = por %p122, %p123
      %p125 = scmp.ne.s32.totalorder %s113, %s114
      %p126 = scmp.eq.s32.totalorder %s19, 15
      %p127 = por %p125, %p126
      %p129 = scmp.ne.s32.totalorder %s114, %s128
      %p130 = scmp.eq.s32.totalorder %s19, 0
      %p131 = por %p129, %p130
      %s132 = ssub.s32 %s20, %s32
      %p133 = scmp.eq.s32.totalorder %s132, 0
      %s135 = sadd.s32 %s134, 1
      %s136 = scalar_select %p133, %s134, %s135
      %p139 = pneg %p133
      %p140 = scmp.eq.s32.totalorder %s13, 15
      %p141 = por %p139, %p140
      %p142 = scmp.ne.s32.totalorder %s134, %s137
      %p143 = scmp.eq.s32.totalorder %s13, 0
      %p144 = por %p142, %p143
      %p145 = scmp.ne.s32.totalorder %s134, %s137
      %p146 = scmp.eq.s32.totalorder %s18, 15
      %p147 = por %p145, %p146
      %p148 = scmp.ne.s32.totalorder %s137, %s138
      %p149 = scmp.eq.s32.totalorder %s18, 0
      %p150 = por %p148, %p149
      %p151 = scmp.ne.s32.totalorder %s137, %s138
      %p152 = scmp.eq.s32.totalorder %s19, 15
      %p153 = por %p151, %p152
      %p155 = scmp.ne.s32.totalorder %s138, %s154
      %p156 = scmp.eq.s32.totalorder %s19, 0
      %p157 = por %p155, %p156
      %p158 = scmp.le.s32.totalorder 1, %s13
      %p159 = scmp.lt.s32.totalorder %s13, 17
      %p160 = pnand %p158, %p159
      %p161 = pneg %p160
      // Predicated region
      $region9: #{tpu_custom_call.1} parent=5 // pred_check
        _
      $region10: #{tpu_custom_call.1} parent=5 // pred_check_branch
        %163 = sbr.rel (%p160) target = $region12
      $region11: #{tpu_custom_call.1} parent=5 // pred_region
        %s164 = ssub.s32 %s13, 1
        // Predicated region
        $region13: #{tpu_custom_call.1} parent=11 // pred_check
          %p165 = pneg %p124
        $region14: #{tpu_custom_call.1} parent=11 // pred_check_branch
          %167 = sbr.rel (%p165) target = $region16
        $region15: #{tpu_custom_call.1} parent=11 // pred_region
          _
        $region16: #{tpu_custom_call.1} parent=11 // pred_fallthru
          _
      $region12: #{tpu_custom_call.1} parent=5 // pred_fallthru
        _
      %p168 = scmp.lt.s32.totalorder %s13, 16
      // Predicated region
      $region17: #{tpu_custom_call.1} parent=5 // pred_check
        %p169 = pneg %p168
      $region18: #{tpu_custom_call.1} parent=5 // pred_check_branch
        %171 = sbr.rel (%p169) target = $region20
      $region19: #{tpu_custom_call.1} parent=5 // pred_region
        // Predicated region
        $region21: #{tpu_custom_call.1} parent=19 // pred_check
          %p172 = pneg %p45
        $region22: #{tpu_custom_call.1} parent=19 // pred_check_branch
          %174 = sbr.rel (%p172) target = $region24
        $region23: #{tpu_custom_call.1} parent=19 // pred_region
          %p175 = scmp.lt.s32.totalorder %s20, 1
          %s176 = scalar_select %p175, %s20, 1
          %s177 = smul.addr %s176, 4
          %s178 = scalar_lea.vmem %s0, %s177
        $region24: #{tpu_custom_call.1} parent=19 // pred_fallthru
          _
        // Predicated region
        $region25: #{tpu_custom_call.1} parent=19 // pred_check
          %p179 = pneg %p71
        $region26: #{tpu_custom_call.1} parent=19 // pred_check_branch
          %181 = sbr.rel (%p179) target = $region28
        $region27: #{tpu_custom_call.1} parent=19 // pred_region
          %p182 = scmp.lt.s32.totalorder %s21, 7
          %s183 = scalar_select %p182, %s21, 7
          %s184 = smul.addr %s183, 4
          %s185 = smul.addr %s184, 4
          %s186 = scalar_lea.vmem %s1, %s185
        $region28: #{tpu_custom_call.1} parent=19 // pred_fallthru
          _
        // Predicated region
        $region29: #{tpu_custom_call.1} parent=19 // pred_check
          %p187 = pneg %p97
        $region30: #{tpu_custom_call.1} parent=19 // pred_check_branch
          %189 = sbr.rel (%p187) target = $region32
        $region31: #{tpu_custom_call.1} parent=19 // pred_region
          %p190 = scmp.lt.s32.totalorder %s21, 7
          %s191 = scalar_select %p190, %s21, 7
          %s192 = smul.addr %s191, 2
          %s193 = scalar_lea.vmem %s2, %s192
        $region32: #{tpu_custom_call.1} parent=19 // pred_fallthru
          _
      $region20: #{tpu_custom_call.1} parent=5 // pred_fallthru
        _
      %p194 = scmp.le.s32.totalorder 1, %s13
      %p195 = scmp.lt.s32.totalorder %s13, 17
      %p196 = pnand %p194, %p195
      %p197 = pneg %p196
      // Predicated region
      $region33: #{tpu_custom_call.1} parent=5 // pred_check
        _
      $region34: #{tpu_custom_call.1} parent=5 // pred_check_branch
        %199 = sbr.rel (%p196) target = $region36
      $region35: #{tpu_custom_call.1} parent=5 // pred_region
        %s200 = ssub.s32 %s13, 1
        %p201 = scmp.lt.s32.totalorder %s22, 1
        %s202 = scalar_select %p201, %s22, 1
        %s203 = smul.addr %s202, 4
        %s204 = scalar_lea.vmem %s0, %s203
        %p205 = pneg %p51
        %p206 = pneg %p48
        %p207 = scmp.lt.s32.totalorder %s23, 7
        %s208 = scalar_select %p207, %s23, 7
        %s209 = smul.addr %s208, 4
        %s210 = smul.addr %s209, 4
        %s211 = scalar_lea.vmem %s1, %s210
        %p212 = pneg %p77
        %p213 = pneg %p74
        %p214 = scmp.lt.s32.totalorder %s23, 7
        %s215 = scalar_select %p214, %s23, 7
        %s216 = smul.addr %s215, 2
        %s217 = scalar_lea.vmem %s2, %s216
        %p218 = pneg %p103
        %p219 = pneg %p100
        %p220 = pneg %p124
        %p221 = pneg %p121
        %p222 = pneg %p150
        %p223 = pneg %p147
        %s224 = sand.u32 %s137, 1
        %s225 = scalar_lea.sflag [#allocation4], %s224
        %s226 = sand.u32 %s137, 1
        %s227 = smul.addr %s226, 8
        %s228 = scalar_lea.vmem [#allocation3], %s227
        %p229 = scmp.lt.s32.totalorder %s22, 1
        %s230 = scalar_select %p229, %s22, 1
        %s231 = smul.addr %s230, 4
        %s232 = scalar_lea.vmem %s0, %s231
        %p233 = scmp.lt.s32.totalorder %s23, 7
        %s234 = scalar_select %p233, %s23, 7
        %s235 = smul.addr %s234, 4
        %s236 = smul.addr %s235, 4
        %s237 = scalar_lea.vmem %s1, %s236
        %p238 = scmp.lt.s32.totalorder %s23, 7
        %s239 = scalar_select %p238, %s23, 7
        %s240 = smul.addr %s239, 2
        %s241 = scalar_lea.vmem %s2, %s240
        %p243 = scmp.eq.s32.totalorder %s23, 0
        // Predicated region
        $region37: #{tpu_custom_call.1} parent=35 // pred_check
          %p244 = pneg %p243
        $region38: #{tpu_custom_call.1} parent=35 // pred_check_branch
          %246 = sbr.rel (%p244) target = $region40
        $region39: #{tpu_custom_call.1} parent=35 // pred_region
          %vm247 = vcmask 261120
          %248 = vst.msk [vmem:[#allocation2] sm:$0xff] %vm247, 0.0
        $region40: #{tpu_custom_call.1} parent=35 // pred_fallthru
          _
        %v249 = vld [vmem:[%s232] sm:$0xf]
        %v250 = vld [vmem:[%s237] sm:$0xf]
        %v251 = vld [vmem:[%s237 + $0x4] sm:$0xf]
        %v252 = vld [vmem:[%s237 + $0x8] sm:$0xf]
        %v253 = vld [vmem:[%s237 + $0xc] sm:$0xf]
        %v254 = vld [vmem:[%s241] sm:$0x3]
        %v259 = vunpack.c.l.b16 %v250
        %v260 = vunpack.c.l.b16 %v251
        %v261 = vunpack.c.l.b16 %v252
        %v262 = vunpack.c.l.b16 %v253
        %v263 = vpack.c.b16 %v260, %v259
        %v264 = vpack.c.b16 %v262, %v261
        %vm267 = vcmask 261120
        %v269 = vsel %vm267, %v249, 0
        %271 = vmatprep.subr.bf16.mxu0 0
        %272 = vmatpush1.bf16.msra.mxu0 0
        %273 = vmatprep.subr.bf16.mxu0 0
        %274 = vmatpush1.bf16.msra.mxu0 0
        %275 = vmatprep.subr.bf16.mxu0 0
        %276 = vmatpush1.bf16.msra.mxu0 0
        %277 = vmatprep.subr.bf16.mxu0 0
        %278 = vmatpush1.bf16.msra.mxu0 0
        %279 = vmatprep.subr.bf16.mxu0 0
        %280 = vmatpush1.bf16.msra.mxu0 0
        %281 = vmatprep.subr.bf16.mxu0 0
        %282 = vmatpush1.bf16.msra.mxu0 0
        %283 = vmatprep.subr.bf16.mxu0 0
        %284 = vmatpush1.bf16.msra.mxu0 %v264
        %285 = vmatprep.subr.bf16.mxu0 0
        %286 = vmatpush1.bf16.msra.mxu0 %v263
        %287 = vmatprep.subr.bf16.mxu0 0
        %288 = vmatpush2.bf16.msra.mxu0 0
        %289 = vmatprep.subr.bf16.mxu0 0
        %290 = vmatpush2.bf16.msra.mxu0 0
        %291 = vmatprep.subr.bf16.mxu0 0
        %292 = vmatpush2.bf16.msra.mxu0 0
        %293 = vmatprep.subr.bf16.mxu0 0
        %294 = vmatpush2.bf16.msra.mxu0 0
        %295 = vmatprep.subr.bf16.mxu0 0
        %296 = vmatpush2.bf16.msra.mxu0 0
        %297 = vmatprep.subr.bf16.mxu0 0
        %298 = vmatpush2.bf16.msra.mxu0 0
        %299 = vmatprep.subr.bf16.mxu0 0
        %300 = vmatpush2.bf16.msra.mxu0 0
        %301 = vmatprep.subr.bf16.mxu0 0
        %302 = vmatpush2.bf16.msra.mxu0 0
        %303 = vmatprep.mubr.bf16.mxu0 0
        %304 = vmatmul.mubr.bf16.gmra.mxu0 %v269
        %v305 = vpop.f32.mrf.mxu0
        %v306 = vadd.f32 0.0, %v305
        %v307 = vpop.f32.mrf.mxu0
        %v308 = vpop.f32.mrf.mxu0
        %v309 = vpop.f32.mrf.mxu0
        %310 = vdwg.mxu0
        %v311 = vmul.f32 %v306, 0.5
        %v312 = vpack.c.bf16 %v311, %v311
        %v313 = vpack.c.bf16 %v306, %v306
        %315 = vrot.lane.b32.xlu0 %v313, 124
        %v316 = vpop.permute.xlu0 %315
        %vm317 = vcmask 31744
        %v319 = vsel %vm317, %v312, 0
        %v322 = vsel %vm317, %v316, 0
        %324 = vmatprep.subr.bf16.mxu0 0
        %325 = vmatpush1.bf16.xpose.msra.mxu0 0
        %326 = vmatprep.subr.bf16.mxu0 0
        %327 = vmatpush1.bf16.xpose.msra.mxu0 0
        %328 = vmatprep.subr.bf16.mxu0 0
        %329 = vmatpush1.bf16.xpose.msra.mxu0 0
        %330 = vmatprep.subr.bf16.mxu0 0
        %331 = vmatpush1.bf16.xpose.msra.mxu0 0
        %332 = vmatprep.subr.bf16.mxu0 0
        %333 = vmatpush1.bf16.xpose.msra.mxu0 0
        %334 = vmatprep.subr.bf16.mxu0 0
        %335 = vmatpush1.bf16.xpose.msra.mxu0 0
        %336 = vmatprep.subr.bf16.mxu0 0
        %337 = vmatpush1.bf16.xpose.msra.mxu0 0
        %338 = vmatprep.subr.bf16.mxu0 0
        %339 = vmatpush1.bf16.xpose.msra.mxu0 %v322
        %340 = vmatprep.subr.bf16.mxu0 0
        %341 = vmatpush2.bf16.xpose.msra.mxu0 0
        %342 = vmatprep.subr.bf16.mxu0 0
        %343 = vmatpush2.bf16.xpose.msra.mxu0 0
        %344 = vmatprep.subr.bf16.mxu0 0
        %345 = vmatpush2.bf16.xpose.msra.mxu0 0
        %346 = vmatprep.subr.bf16.mxu0 0
        %347 = vmatpush2.bf16.xpose.msra.mxu0 0
        %348 = vmatprep.subr.bf16.mxu0 0
        %349 = vmatpush2.bf16.xpose.msra.mxu0 0
        %350 = vmatprep.subr.bf16.mxu0 0
        %351 = vmatpush2.bf16.xpose.msra.mxu0 0
        %352 = vmatprep.subr.bf16.mxu0 0
        %353 = vmatpush2.bf16.xpose.msra.mxu0 0
        %354 = vmatprep.subr.bf16.mxu0 0
        %355 = vmatpush2.bf16.xpose.msra.mxu0 0
        %356 = vmatprep.mubr.bf16.mxu0 0
        %357 = vmatmul.mubr.bf16.gmra.mxu0 %v319
        %v358 = vpop.f32.mrf.mxu0
        %v359 = vadd.f32 0.0, %v358
        %v360 = vpop.f32.mrf.mxu0
        %v361 = vpop.f32.mrf.mxu0
        %v362 = vpop.f32.mrf.mxu0
        %363 = vdwg.mxu0
        %vm364 = vcmask 64512
        %v365 = vsel %vm364, %v359, -inf
        %366 = vmax.xlane.f32.xlu0 %v365
        %v367 = vpop.xlane.xlu0 %366
        %v368 = vsub.f32 %v359, %v367
        %v369 = vmul.f32 %v368, 1.442695
        %v370 = vpow.pop %v369
        %v371 = vsel %vm364, %v370, 0.0
        %372 = vadd.xlane.f32.xlu0 %v371
        %v373 = vpop.xlane.xlu0 %372
        %v374 = vpack.c.bf16 %v370, %v370
        %375 = vrot.lane.b32.xlu0 %v313, 120
        %v376 = vpop.permute.xlu0 %375
        %v378 = vsel %vm364, %v374, 0
        %vm380 = vcmask 1043456
        %v382 = vsel %vm380, %v376, 0
        %384 = vmatprep.subr.bf16.mxu0 0
        %385 = vmatpush1.bf16.msra.mxu0 0
        %386 = vmatprep.subr.bf16.mxu0 0
        %387 = vmatpush1.bf16.msra.mxu0 0
        %388 = vmatprep.subr.bf16.mxu0 0
        %389 = vmatpush1.bf16.msra.mxu0 0
        %390 = vmatprep.subr.bf16.mxu0 0
        %391 = vmatpush1.bf16.msra.mxu0 0
        %392 = vmatprep.subr.bf16.mxu0 0
        %393 = vmatpush1.bf16.msra.mxu0 0
        %394 = vmatprep.subr.bf16.mxu0 0
        %395 = vmatpush1.bf16.msra.mxu0 0
        %396 = vmatprep.subr.bf16.mxu0 0
        %397 = vmatpush1.bf16.msra.mxu0 0
        %398 = vmatprep.subr.bf16.mxu0 0
        %399 = vmatpush1.bf16.msra.mxu0 %v382
        %400 = vmatprep.subr.bf16.mxu0 0
        %401 = vmatpush2.bf16.msra.mxu0 0
        %402 = vmatprep.subr.bf16.mxu0 0
        %403 = vmatpush2.bf16.msra.mxu0 0
        %404 = vmatprep.subr.bf16.mxu0 0
        %405 = vmatpush2.bf16.msra.mxu0 0
        %406 = vmatprep.subr.bf16.mxu0 0
        %407 = vmatpush2.bf16.msra.mxu0 0
        %408 = vmatprep.subr.bf16.mxu0 0
        %409 = vmatpush2.bf16.msra.mxu0 0
        %410 = vmatprep.subr.bf16.mxu0 0
        %411 = vmatpush2.bf16.msra.mxu0 0
        %412 = vmatprep.subr.bf16.mxu0 0
        %413 = vmatpush2.bf16.msra.mxu0 0
        %414 = vmatprep.subr.bf16.mxu0 0
        %415 = vmatpush2.bf16.msra.mxu0 0
        %416 = vmatprep.mubr.bf16.mxu0 0
        %417 = vmatmul.mubr.bf16.gmra.mxu0 %v378
        %v418 = vpop.f32.mrf.mxu0
        %v419 = vadd.f32 0.0, %v418
        %v420 = vpop.f32.mrf.mxu0
        %v421 = vpop.f32.mrf.mxu0
        %v422 = vpop.f32.mrf.mxu0
        %423 = vdwg.mxu0
        %v424 = vrcp.pop %v373
        %v425 = vmul.f32 %v419, %v424
        %v426 = vld [vmem:[#allocation2] sm:$0xff]
        %v427 = vpack.c.bf16 %v425, %v425
        %v429 = vsel %vm317, %v427, 0
        %vm431 = vcmask 1041408
        %v433 = vsel %vm431, %v254, 0
        %435 = vmatprep.subr.bf16.mxu0 0
        %436 = vmatpush1.bf16.msra.mxu0 0
        %437 = vmatprep.subr.bf16.mxu0 0
        %438 = vmatpush1.bf16.msra.mxu0 0
        %439 = vmatprep.subr.bf16.mxu0 0
        %440 = vmatpush1.bf16.msra.mxu0 0
        %441 = vmatprep.subr.bf16.mxu0 0
        %442 = vmatpush1.bf16.msra.mxu0 0
        %443 = vmatprep.subr.bf16.mxu0 0
        %444 = vmatpush1.bf16.msra.mxu0 0
        %445 = vmatprep.subr.bf16.mxu0 0
        %446 = vmatpush1.bf16.msra.mxu0 0
        %447 = vmatprep.subr.bf16.mxu0 0
        %448 = vmatpush1.bf16.msra.mxu0 0
        %449 = vmatprep.subr.bf16.mxu0 0
        %450 = vmatpush1.bf16.msra.mxu0 %v433
        %451 = vmatprep.subr.bf16.mxu0 0
        %452 = vmatpush2.bf16.msra.mxu0 0
        %453 = vmatprep.subr.bf16.mxu0 0
        %454 = vmatpush2.bf16.msra.mxu0 0
        %455 = vmatprep.subr.bf16.mxu0 0
        %456 = vmatpush2.bf16.msra.mxu0 0
        %457 = vmatprep.subr.bf16.mxu0 0
        %458 = vmatpush2.bf16.msra.mxu0 0
        %459 = vmatprep.subr.bf16.mxu0 0
        %460 = vmatpush2.bf16.msra.mxu0 0
        %461 = vmatprep.subr.bf16.mxu0 0
        %462 = vmatpush2.bf16.msra.mxu0 0
        %463 = vmatprep.subr.bf16.mxu0 0
        %464 = vmatpush2.bf16.msra.mxu0 0
        %465 = vmatprep.subr.bf16.mxu0 0
        %466 = vmatpush2.bf16.msra.mxu0 0
        %467 = vmatprep.mubr.bf16.mxu0 0
        %468 = vmatmul.mubr.bf16.gmra.mxu0 %v429
        %v469 = vpop.f32.mrf.mxu0
        %v470 = vadd.f32 0.0, %v469
        %v471 = vpop.f32.mrf.mxu0
        %v472 = vpop.f32.mrf.mxu0
        %v473 = vpop.f32.mrf.mxu0
        %474 = vdwg.mxu0
        %v475 = vadd.f32 %v426, %v470
        %476 = vst.msk [vmem:[#allocation2] sm:$0xff] %vm267, %v475
        %p477 = scmp.eq.s32.totalorder %s23, 7
        // Predicated region
        $region41: #{tpu_custom_call.1} parent=35 // pred_check
          %p478 = pneg %p477
        $region42: #{tpu_custom_call.1} parent=35 // pred_check_branch
          %480 = sbr.rel (%p478) target = $region44
        $region43: #{tpu_custom_call.1} parent=35 // pred_region
          %v481 = vld [vmem:[#allocation2] sm:$0xff]
          %v482 = vld [vmem:[%s3] sm:$0x1]
          %v484 = vlaneseq
          %v485 = vshrl.u32 %v484, 7
          %v486 = vsub.s32 0, %v485
          %v487 = vrot.slane %v482, %v486
          %v489 = vadd.f32 %v481, %v487
          %490 = vst.msk [vmem:[%s228] sm:$0xff] %vm267, %v489
        $region44: #{tpu_custom_call.1} parent=35 // pred_fallthru
          _
        %s491 = sand.u32 %s137, 1
        %s492 = scalar_lea.sflag [#allocation4], %s491
        %s493 = sand.u32 %s137, 1
        %s494 = smul.addr %s493, 8
        %s495 = scalar_lea.vmem [#allocation3], %s494
        // Predicated region
        $region45: #{tpu_custom_call.1} parent=35 // pred_check
          %p496 = pneg %p147
        $region46: #{tpu_custom_call.1} parent=35 // pred_check_branch
          %498 = sbr.rel (%p496) target = $region48
        $region47: #{tpu_custom_call.1} parent=35 // pred_region
          %s500 = ssub.s32 128, 128
          %501 = vsyncadd %s492, %s500
          %s502 = smul.addr %s22, 128
          %s503 = scalar_lea.hbm %s4, %s502
          %s505 = sshll.u32 %s495, 4
          %s506 = int_to_ptr.vmem [resolvable:$true] %s505
          %508 = dma.vmem_to_hbm [thread:$0]  %s506, 128, %s503, %s492
        $region48: #{tpu_custom_call.1} parent=35 // pred_fallthru
          _
      $region36: #{tpu_custom_call.1} parent=5 // pred_fallthru
        _
      %p509 = scmp.le.s32.totalorder 2, %s13
      // Predicated region
      $region49: #{tpu_custom_call.1} parent=5 // pred_check
        %p510 = pneg %p509
      $region50: #{tpu_custom_call.1} parent=5 // pred_check_branch
        %512 = sbr.rel (%p510) target = $region52
      $region51: #{tpu_custom_call.1} parent=5 // pred_region
        %s513 = ssub.s32 %s13, 2
        // Predicated region
        $region53: #{tpu_custom_call.1} parent=51 // pred_check
          %p514 = pneg %p153
        $region54: #{tpu_custom_call.1} parent=51 // pred_check_branch
          %516 = sbr.rel (%p514) target = $region56
        $region55: #{tpu_custom_call.1} parent=51 // pred_region
          %s517 = sand.u32 %s138, 1
          %s518 = scalar_lea.sflag [#allocation4], %s517
          %s519 = sand.u32 %s138, 1
          %s520 = smul.addr %s519, 8
          %s521 = scalar_lea.vmem [#allocation3], %s520
          %522 = dma.done %s518, 128
        $region56: #{tpu_custom_call.1} parent=51 // pred_fallthru
          _
      $region52: #{tpu_custom_call.1} parent=5 // pred_fallthru
        _
    $region6: #{tpu_custom_call.1} parent=1 // loop_footer
      %s17 = sadd.s32 1, %s13
    $region7: #{tpu_custom_call.1} parent=1 // loop_footer_branch
      %12 = sbr.rel target = $region3
    $region8: #{tpu_custom_call.1} parent=1 // loop_exit
      _
    %523 = vsyncpa [#allocation4], 1
    %s524 = scalar_lea.sflag [#allocation4], 1
    %525 = vsyncpa %s524, 1

</llo_original>
